<compile_context>
chip_gen: v7x
topology: tpu7x:2x2x1
jax: 0.10.0
libtpu: 0.0.40
codegen_flags: <defaults>
</compile_context>

<pallas_src>
import jax
import jax.numpy as jnp
from jax.experimental import pallas as pl
from jax.experimental.pallas import tpu as pltpu

LANES = 128      # lane width (last dim)
TR_MAX = 2048    # max rows per grid step: 2048*128*4B = 1 MiB per f32 input tile
NUM_CORES = 2    # leading "parallel" grid axis (v7x megacore sharding)
NEG_PAD = -60.0  # sigmoid(-60) ~ 8.8e-27: padded y_pred elements contribute ~0


def _round_up(x, m):
    return ((x + m - 1) // m) * m


def _tversky_sums_kernel(yp_ref, yt_ref, tp_ref, sp_ref, st_ref):
    # tp/sp/st refs are (8, 128) accumulators, resident across the reduction
    # axis (grid axis 1); each core (grid axis 0) owns its own output slab.
    @pl.when(pl.program_id(1) == 0)
    def _():
        tp_ref[...] = jnp.zeros_like(tp_ref)
        sp_ref[...] = jnp.zeros_like(sp_ref)
        st_ref[...] = jnp.zeros_like(st_ref)

    x = yp_ref[...].astype(jnp.float32)   # logits  (native dtype DMA'd, cast in VMEM)
    t = yt_ref[...].astype(jnp.float32)   # targets

    # sigmoid(x) = 1 / (1 + exp(-x)); exp and the approximate reciprocal both
    # run on the EUP slot, leaving the VPU for the products/adds.
    p = pl.reciprocal(1.0 + jnp.exp(-x), approx=True)

    # Fold the (TR, 128) tile into an (8, 128) vreg-shaped partial sum.  The
    # reshape groups whole (8, 128) sublane tiles, so the sum over axis 0 is
    # pure VPU vreg adds — no cross-lane/sublane XLU work in the hot loop.
    tr = x.shape[0]
    tp_ref[...] += (t * p).reshape(tr // 8, 8, LANES).sum(axis=0)
    sp_ref[...] += p.reshape(tr // 8, 8, LANES).sum(axis=0)
    st_ref[...] += t.reshape(tr // 8, 8, LANES).sum(axis=0)


def tversky_loss(y_pred, y_true, alpha=0.7, smooth=1e-5):
    assert y_pred.shape == y_true.shape
    n = y_pred.size

    # Tile sizing (all static Python arithmetic on shapes).
    rows_needed = pl.cdiv(n, LANES)
    rows_per_core = _round_up(pl.cdiv(rows_needed, NUM_CORES), 8)
    tr = min(TR_MAX, rows_per_core)
    steps = pl.cdiv(rows_per_core, tr)            # reduction steps per core
    rows_padded = NUM_CORES * steps * tr
    padded_n = rows_padded * LANES
    pad = padded_n - n

    yp = jnp.ravel(y_pred)
    yt = jnp.ravel(y_true)
    if pad:
        # Sentinel padding: y_pred -> very negative logit (sigmoid ~ 0),
        # y_true -> 0, so padded elements contribute nothing and the kernel
        # hot path carries no mask.  (No-op copy avoided entirely when the
        # input size already lines up.)
        yp = jnp.concatenate([yp, jnp.full((pad,), NEG_PAD, dtype=yp.dtype)])
        yt = jnp.concatenate([yt, jnp.zeros((pad,), dtype=yt.dtype)])
    yp = yp.reshape(rows_padded, LANES)
    yt = yt.reshape(rows_padded, LANES)

    in_spec = pl.BlockSpec((tr, LANES), lambda c, i: (c * steps + i, 0))
    acc_spec = pl.BlockSpec((8, LANES), lambda c, i: (c, 0))
    acc_shape = jax.ShapeDtypeStruct((NUM_CORES * 8, LANES), jnp.float32)

    tp_p, sp_p, st_p = pl.pallas_call(
        _tversky_sums_kernel,
        out_shape=(acc_shape, acc_shape, acc_shape),
        grid_spec=pltpu.PrefetchScalarGridSpec(
            num_scalar_prefetch=0,
            grid=(NUM_CORES, steps),
            in_specs=[in_spec, in_spec],
            out_specs=[acc_spec, acc_spec, acc_spec],
        ),
        compiler_params=pltpu.CompilerParams(
            dimension_semantics=("parallel", "arbitrary"),
        ),
    )(yp, yt)

    # Final cross-lane reduction + scalar combine in plain JAX glue.
    tp = jnp.sum(tp_p)          # sum(y_true * sigmoid(y_pred))
    sum_p = jnp.sum(sp_p)       # sum(sigmoid(y_pred))
    sum_t = jnp.sum(st_p)       # sum(y_true)
    fn = sum_t - tp             # sum(y_true * (1 - p))
    fp = sum_p - tp             # sum((1 - y_true) * p)
    return 1.0 - (tp + smooth) / (tp + alpha * fn + (1.0 - alpha) * fp + smooth)


if __name__ == "__main__":
    key = jax.random.PRNGKey(0)
    k1, k2 = jax.random.split(key)
    shape = (2, 4, 16, 16)  # (B, C, H, W) like PyTorch NCHW
    y_pred = jax.random.normal(k1, shape, dtype=jnp.float32)             # logits
    y_true = (jax.random.uniform(k2, shape) > 0.5).astype(jnp.float32)   # binary mask

    loss = tversky_loss(y_pred, y_true)
    jax.block_until_ready(loss)

    # Pure-JAX reference (mirrors the PyTorch forward) for sanity.
    yp_ref = jax.nn.sigmoid(y_pred).reshape(-1)
    yt_ref = y_true.reshape(-1)
    tp_r = jnp.sum(yt_ref * yp_ref)
    fn_r = jnp.sum(yt_ref * (1.0 - yp_ref))
    fp_r = jnp.sum((1.0 - yt_ref) * yp_ref)
    ref = 1.0 - (tp_r + 1e-5) / (tp_r + 0.7 * fn_r + 0.3 * fp_r + 1e-5)
    # Kernel uses the EUP approximate reciprocal inside sigmoid -> allow ~1e-3 slack.
    assert jnp.allclose(loss, ref, rtol=2e-3, atol=2e-3), (loss, ref)

    print("KERNEL_OK")
</pallas_src>

<mosaic_0001>
module attributes {stable_mosaic.version = 11 : i64} {
  func.func @_tversky_sums_kernel(%arg0: i32, %arg1: i32, %arg2: memref<8x128xf32, #tpu.memory_space<vmem>>, %arg3: memref<8x128xf32, #tpu.memory_space<vmem>>, %arg4: memref<8x128xf32, #tpu.memory_space<vmem>>, %arg5: memref<8x128xf32, #tpu.memory_space<vmem>>, %arg6: memref<8x128xf32, #tpu.memory_space<vmem>>) attributes {dimension_semantics = [#tpu.dimension_semantics<parallel>, #tpu.dimension_semantics<arbitrary>], iteration_bounds = array<i64: 2, 1>, scalar_prefetch = 0 : i64, scratch_operands = 0 : i64, tpu.core_type = #tpu.core_type<tc>, window_params = [{transform_indices = @transform_0, window_bounds = array<i64: 8, 128>}, {transform_indices = @transform_1, window_bounds = array<i64: 8, 128>}, {transform_indices = @transform_2, window_bounds = array<i64: 8, 128>}, {transform_indices = @transform_3, window_bounds = array<i64: 8, 128>}, {transform_indices = @transform_4, window_bounds = array<i64: 8, 128>}]} {
    %c0_i32 = arith.constant 0 : i32
    %0 = arith.cmpi eq, %arg1, %c0_i32 : i32
    %1 = arith.extui %0 : i1 to i32
    %c0_i32_0 = arith.constant 0 : i32
    %2 = arith.cmpi ne, %1, %c0_i32_0 : i32
    scf.if %2 {
      %cst_20 = arith.constant 0.000000e+00 : f32
      %27 = vector.broadcast %cst_20 : f32 to vector<8x128xf32>
      %c0_21 = arith.constant 0 : index
      %c0_22 = arith.constant 0 : index
      %28 = vector.load %arg4[%c0_21, %c0_22] : memref<8x128xf32, #tpu.memory_space<vmem>>, vector<8x128xf32>
      tpu.vector_store %arg4[%c0_21, %c0_22], %27 {strides = array<i32>} : memref<8x128xf32, #tpu.memory_space<vmem>>, vector<8x128xf32>,
      %cst_23 = arith.constant 0.000000e+00 : f32
      %29 = vector.broadcast %cst_23 : f32 to vector<8x128xf32>
      %c0_24 = arith.constant 0 : index
      %c0_25 = arith.constant 0 : index
      %30 = vector.load %arg5[%c0_24, %c0_25] : memref<8x128xf32, #tpu.memory_space<vmem>>, vector<8x128xf32>
      tpu.vector_store %arg5[%c0_24, %c0_25], %29 {strides = array<i32>} : memref<8x128xf32, #tpu.memory_space<vmem>>, vector<8x128xf32>,
      %cst_26 = arith.constant 0.000000e+00 : f32
      %31 = vector.broadcast %cst_26 : f32 to vector<8x128xf32>
      %c0_27 = arith.constant 0 : index
      %c0_28 = arith.constant 0 : index
      %32 = vector.load %arg6[%c0_27, %c0_28] : memref<8x128xf32, #tpu.memory_space<vmem>>, vector<8x128xf32>
      tpu.vector_store %arg6[%c0_27, %c0_28], %31 {strides = array<i32>} : memref<8x128xf32, #tpu.memory_space<vmem>>, vector<8x128xf32>,
    } else {
    }
    %c0 = arith.constant 0 : index
    %c0_1 = arith.constant 0 : index
    %3 = vector.load %arg2[%c0, %c0_1] : memref<8x128xf32, #tpu.memory_space<vmem>>, vector<8x128xf32>
    %c0_2 = arith.constant 0 : index
    %c0_3 = arith.constant 0 : index
    %4 = vector.load %arg3[%c0_2, %c0_3] : memref<8x128xf32, #tpu.memory_space<vmem>>, vector<8x128xf32>
    %cst = arith.constant 0.000000e+00 : f32
    %5 = vector.broadcast %cst : f32 to vector<8x128xf32>
    %6 = arith.subf %5, %3 : vector<8x128xf32>
    %7 = math.exp %6 : vector<8x128xf32>
    %cst_4 = arith.constant 1.000000e+00 : f32
    %8 = vector.broadcast %cst_4 : f32 to vector<8x128xf32>
    %9 = arith.addf %8, %7 : vector<8x128xf32>
    %10 = tpu.reciprocal %9 {approx = true} : vector<8x128xf32> -> vector<8x128xf32>
    %c0_5 = arith.constant 0 : index
    %c0_6 = arith.constant 0 : index
    %11 = vector.load %arg4[%c0_5, %c0_6] : memref<8x128xf32, #tpu.memory_space<vmem>>, vector<8x128xf32>
    %12 = arith.mulf %4, %10 : vector<8x128xf32>
    %13 = vector.shape_cast %12 : vector<8x128xf32> to vector<1x8x128xf32>
    %cst_7 = arith.constant dense<0.000000e+00> : vector<8x128xf32>
    %14 = vector.multi_reduction <add>, %13, %cst_7 [0] : vector<1x8x128xf32> to vector<8x128xf32>
    %15 = arith.addf %11, %14 : vector<8x128xf32>
    %c0_8 = arith.constant 0 : index
    %c0_9 = arith.constant 0 : index
    %16 = vector.load %arg4[%c0_8, %c0_9] : memref<8x128xf32, #tpu.memory_space<vmem>>, vector<8x128xf32>
    tpu.vector_store %arg4[%c0_8, %c0_9], %15 {strides = array<i32>} : memref<8x128xf32, #tpu.memory_space<vmem>>, vector<8x128xf32>,
    %c0_10 = arith.constant 0 : index
    %c0_11 = arith.constant 0 : index
    %17 = vector.load %arg5[%c0_10, %c0_11] : memref<8x128xf32, #tpu.memory_space<vmem>>, vector<8x128xf32>
    %18 = vector.shape_cast %10 : vector<8x128xf32> to vector<1x8x128xf32>
    %cst_12 = arith.constant dense<0.000000e+00> : vector<8x128xf32>
    %19 = vector.multi_reduction <add>, %18, %cst_12 [0] : vector<1x8x128xf32> to vector<8x128xf32>
    %20 = arith.addf %17, %19 : vector<8x128xf32>
    %c0_13 = arith.constant 0 : index
    %c0_14 = arith.constant 0 : index
    %21 = vector.load %arg5[%c0_13, %c0_14] : memref<8x128xf32, #tpu.memory_space<vmem>>, vector<8x128xf32>
    tpu.vector_store %arg5[%c0_13, %c0_14], %20 {strides = array<i32>} : memref<8x128xf32, #tpu.memory_space<vmem>>, vector<8x128xf32>,
    %c0_15 = arith.constant 0 : index
    %c0_16 = arith.constant 0 : index
    %22 = vector.load %arg6[%c0_15, %c0_16] : memref<8x128xf32, #tpu.memory_space<vmem>>, vector<8x128xf32>
    %23 = vector.shape_cast %4 : vector<8x128xf32> to vector<1x8x128xf32>
    %cst_17 = arith.constant dense<0.000000e+00> : vector<8x128xf32>
    %24 = vector.multi_reduction <add>, %23, %cst_17 [0] : vector<1x8x128xf32> to vector<8x128xf32>
    %25 = arith.addf %22, %24 : vector<8x128xf32>
    %c0_18 = arith.constant 0 : index
    %c0_19 = arith.constant 0 : index
    %26 = vector.load %arg6[%c0_18, %c0_19] : memref<8x128xf32, #tpu.memory_space<vmem>>, vector<8x128xf32>
    tpu.vector_store %arg6[%c0_18, %c0_19], %25 {strides = array<i32>} : memref<8x128xf32, #tpu.memory_space<vmem>>, vector<8x128xf32>,
    return
  }
  func.func @transform_0(%arg0: i32, %arg1: i32) -> (i32, i32) {
    %c1_i32 = arith.constant 1 : i32
    %0 = arith.muli %arg0, %c1_i32 : i32
    %1 = arith.addi %0, %arg1 : i32
    %c0_i32 = arith.constant 0 : i32
    %c0_i32_0 = arith.constant 0 : i32
    return %1, %c0_i32 : i32, i32
  }
  func.func @transform_1(%arg0: i32, %arg1: i32) -> (i32, i32) {
    %c1_i32 = arith.constant 1 : i32
    %0 = arith.muli %arg0, %c1_i32 : i32
    %1 = arith.addi %0, %arg1 : i32
    %c0_i32 = arith.constant 0 : i32
    %c0_i32_0 = arith.constant 0 : i32
    return %1, %c0_i32 : i32, i32
  }
  func.func @transform_2(%arg0: i32, %arg1: i32) -> (i32, i32) {
    %c0_i32 = arith.constant 0 : i32
    %c0_i32_0 = arith.constant 0 : i32
    return %arg0, %c0_i32 : i32, i32
  }
  func.func @transform_3(%arg0: i32, %arg1: i32) -> (i32, i32) {
    %c0_i32 = arith.constant 0 : i32
    %c0_i32_0 = arith.constant 0 : i32
    return %arg0, %c0_i32 : i32, i32
  }
  func.func @transform_4(%arg0: i32, %arg1: i32) -> (i32, i32) {
    %c0_i32 = arith.constant 0 : i32
    %c0_i32_0 = arith.constant 0 : i32
    return %arg0, %c0_i32 : i32, i32
  }
}

</mosaic_0001>

<llo_original>
// kernel: tpu_custom_call.1
$region0: #{tpu_custom_call.1}
  #allocation0 [shape = 'u32[]', space=smem, size = 0x4, offset = 0x4, fixed_abs, tag = 'smem constant byte address 0x4 - core index']
  #allocation1 [shape = 'u32[144,128]{1,0:T(1,128)}', space=vmem, size = 0x12000, scoped, tag = 'internal scratch']
  %s0 = inlined_call_operand.hbm [shape: f32[16,128], index: 0, kind: input, shape index: {}]
  %s1 = inlined_call_operand.hbm [shape: f32[16,128], index: 1, kind: input, shape index: {}]
  %s2 = inlined_call_operand.hbm [shape: f32[16,128], index: 2, kind: output, shape index: {0}]
  %s3 = inlined_call_operand.hbm [shape: f32[16,128], index: 3, kind: output, shape index: {1}]
  %s4 = inlined_call_operand.hbm [shape: f32[16,128], index: 4, kind: output, shape index: {2}]
  %5 = xla_tuple %s2, %s3, %s4
  %s6 = sld [smem:[#allocation0]]
  $region69: #{tpu_custom_call.1} parent=0
    _
  %s8 = ssub.s32 1, %s6
  %s9 = scalar_select 0, %s8, %s6
  $region1: #{tpu_custom_call.1} parent=0
    #allocation2 [shape = 'u8[8192]{0}', space=vmem, size = 0x2000, scoped, tag = 'input window, operand 0']
    #allocation3 [shape = 's32[2]{0}', space=sflag, size = 0x8, scoped, tag = 'scoped memory for tpu_custom_call.1']
    #allocation4 [shape = 's32[2]{0}', space=sflag, size = 0x8, scoped, tag = 'scoped memory for tpu_custom_call.1']
    #allocation5 [shape = 'u8[8192]{0}', space=vmem, size = 0x2000, scoped, tag = 'input window, operand 1']
    #allocation6 [shape = 's32[2]{0}', space=sflag, size = 0x8, scoped, tag = 'scoped memory for tpu_custom_call.1']
    #allocation7 [shape = 'u8[8192]{0}', space=vmem, size = 0x2000, scoped, tag = 'output window, operand 0']
    #allocation8 [shape = 'u8[8192]{0}', space=vmem, size = 0x2000, scoped, tag = 'output window, operand 1']
    #allocation9 [shape = 's32[2]{0}', space=sflag, size = 0x8, scoped, tag = 'scoped memory for tpu_custom_call.1']
    #allocation10 [shape = 'u8[8192]{0}', space=vmem, size = 0x2000, scoped, tag = 'output window, operand 2']
    %10 = vsyncpa [#allocation3], 0
    %s11 = scalar_lea.sflag [#allocation3], 1
    %12 = vsyncpa %s11, 0
    %13 = vsyncpa [#allocation6], 0
    %s14 = scalar_lea.sflag [#allocation6], 1
    %15 = vsyncpa %s14, 0
    %16 = vsyncpa [#allocation4], 0
    %s17 = scalar_lea.sflag [#allocation4], 1
    %18 = vsyncpa %s17, 0
    %19 = vsyncpa [#allocation9], 0
    %s20 = scalar_lea.sflag [#allocation9], 1
    %21 = vsyncpa %s20, 0
    loop: start=0, step=1, limit=4
    $region2: #{tpu_custom_call.1} parent=1 // loop_pre_header
      _
    $region3: #{tpu_custom_call.1} parent=1 // loop_header
      %s23 = sphi 0, %s27
      %p24 = scmp.ge.s32.totalorder %s23, 4
      %s30 = sphi 0, %s42
      %s31 = sphi 0, %s38
      %s32 = sphi 0, %s30
      %s33 = sphi 0, %s31
      %s34 = sphi 0, %s32
      %s35 = sphi 0, %s33
      %s47 = sphi 0, %s49
      %s50 = sphi 0, %s47
      %s51 = sphi 0, %s50
      %s67 = sphi 0, %s51
      %s75 = sphi 0, %s77
      %s78 = sphi 0, %s75
      %s79 = sphi 0, %s78
      %s95 = sphi 0, %s79
      %s101 = sphi 0, %s103
      %s104 = sphi 0, %s101
      %s105 = sphi 0, %s104
      %s121 = sphi 0, %s105
      %s127 = sphi 0, %s129
      %s130 = sphi 0, %s127
      %s131 = sphi 0, %s130
      %s147 = sphi 0, %s131
      %s153 = sphi 0, %s155
      %s156 = sphi 0, %s153
      %s157 = sphi 0, %s156
      %s173 = sphi 0, %s157
    $region4: #{tpu_custom_call.1} parent=1 // loop_header_branch
      %26 = sbr.rel (%p24) target = $region8
    $region5: #{tpu_custom_call.1} parent=1 // loop_body
      %s28 = ssub.s32 %s23, 1
      %s29 = ssub.s32 %s23, 2
      %s36 = sadd.s32 1, %s31
      %p37 = scmp.ge.s32.totalorder %s36, 1
      %s38 = scalar_select %p37, 0, %s36
      %s39 = sadd.s32 1, %s30
      %s40 = scalar_select %p37, %s39, %s30
      %p41 = scmp.ge.s32.totalorder %s40, 2
      %s42 = scalar_select %p41, 0, %s40
      %s43 = sadd.s32 %s30, %s31
      %s44 = sadd.s32 %s42, %s38
      %s45 = ssub.s32 %s43, %s44
      %p46 = scmp.eq.s32.totalorder %s45, 0
      %s48 = sadd.s32 %s47, 1
      %s49 = scalar_select %p46, %s47, %s48
      %p52 = pneg %p46
      %p53 = scmp.eq.s32.totalorder %s23, 1
      %p54 = por %p52, %p53
      %p55 = scmp.ne.s32.totalorder %s47, %s50
      %p56 = scmp.eq.s32.totalorder %s23, 0
      %p57 = por %p55, %p56
      %p58 = scmp.ne.s32.totalorder %s47, %s50
      %p59 = scmp.eq.s32.totalorder %s28, 1
      %p60 = por %p58, %p59
      %p61 = scmp.ne.s32.totalorder %s50, %s51
      %p62 = scmp.eq.s32.totalorder %s28, 0
      %p63 = por %p61, %p62
      %p64 = scmp.ne.s32.totalorder %s50, %s51
      %p65 = scmp.eq.s32.totalorder %s29, 1
      %p66 = por %p64, %p65
      %p68 = scmp.ne.s32.totalorder %s51, %s67
      %p69 = scmp.eq.s32.totalorder %s29, 0
      %p70 = por %p68, %p69
      %s71 = sadd.s32 %s30, %s31
      %s72 = sadd.s32 %s42, %s38
      %s73 = ssub.s32 %s71, %s72
      %p74 = scmp.eq.s32.totalorder %s73, 0
      %s76 = sadd.s32 %s75, 1
      %s77 = scalar_select %p74, %s75, %s76
      %p80 = pneg %p74
      %p81 = scmp.eq.s32.totalorder %s23, 1
      %p82 = por %p80, %p81
      %p83 = scmp.ne.s32.totalorder %s75, %s78
      %p84 = scmp.eq.s32.totalorder %s23, 0
      %p85 = por %p83, %p84
      %p86 = scmp.ne.s32.totalorder %s75, %s78
      %p87 = scmp.eq.s32.totalorder %s28, 1
      %p88 = por %p86, %p87
      %p89 = scmp.ne.s32.totalorder %s78, %s79
      %p90 = scmp.eq.s32.totalorder %s28, 0
      %p91 = por %p89, %p90
      %p92 = scmp.ne.s32.totalorder %s78, %s79
      %p93 = scmp.eq.s32.totalorder %s29, 1
      %p94 = por %p92, %p93
      %p96 = scmp.ne.s32.totalorder %s79, %s95
      %p97 = scmp.eq.s32.totalorder %s29, 0
      %p98 = por %p96, %p97
      %s99 = ssub.s32 %s30, %s42
      %p100 = scmp.eq.s32.totalorder %s99, 0
      %s102 = sadd.s32 %s101, 1
      %s103 = scalar_select %p100, %s101, %s102
      %p106 = pneg %p100
      %p107 = scmp.eq.s32.totalorder %s23, 1
      %p108 = por %p106, %p107
      %p109 = scmp.ne.s32.totalorder %s101, %s104
      %p110 = scmp.eq.s32.totalorder %s23, 0
      %p111 = por %p109, %p110
      %p112 = scmp.ne.s32.totalorder %s101, %s104
      %p113 = scmp.eq.s32.totalorder %s28, 1
      %p114 = por %p112, %p113
      %p115 = scmp.ne.s32.totalorder %s104, %s105
      %p116 = scmp.eq.s32.totalorder %s28, 0
      %p117 = por %p115, %p116
      %p118 = scmp.ne.s32.totalorder %s104, %s105
      %p119 = scmp.eq.s32.totalorder %s29, 1
      %p120 = por %p118, %p119
      %p122 = scmp.ne.s32.totalorder %s105, %s121
      %p123 = scmp.eq.s32.totalorder %s29, 0
      %p124 = por %p122, %p123
      %s125 = ssub.s32 %s30, %s42
      %p126 = scmp.eq.s32.totalorder %s125, 0
      %s128 = sadd.s32 %s127, 1
      %s129 = scalar_select %p126, %s127, %s128
      %p132 = pneg %p126
      %p133 = scmp.eq.s32.totalorder %s23, 1
      %p134 = por %p132, %p133
      %p135 = scmp.ne.s32.totalorder %s127, %s130
      %p136 = scmp.eq.s32.totalorder %s23, 0
      %p137 = por %p135, %p136
      %p138 = scmp.ne.s32.totalorder %s127, %s130
      %p139 = scmp.eq.s32.totalorder %s28, 1
      %p140 = por %p138, %p139
      %p141 = scmp.ne.s32.totalorder %s130, %s131
      %p142 = scmp.eq.s32.totalorder %s28, 0
      %p143 = por %p141, %p142
      %p144 = scmp.ne.s32.totalorder %s130, %s131
      %p145 = scmp.eq.s32.totalorder %s29, 1
      %p146 = por %p144, %p145
      %p148 = scmp.ne.s32.totalorder %s131, %s147
      %p149 = scmp.eq.s32.totalorder %s29, 0
      %p150 = por %p148, %p149
      %s151 = ssub.s32 %s30, %s42
      %p152 = scmp.eq.s32.totalorder %s151, 0
      %s154 = sadd.s32 %s153, 1
      %s155 = scalar_select %p152, %s153, %s154
      %p158 = pneg %p152
      %p159 = scmp.eq.s32.totalorder %s23, 1
      %p160 = por %p158, %p159
      %p161 = scmp.ne.s32.totalorder %s153, %s156
      %p162 = scmp.eq.s32.totalorder %s23, 0
      %p163 = por %p161, %p162
      %p164 = scmp.ne.s32.totalorder %s153, %s156
      %p165 = scmp.eq.s32.totalorder %s28, 1
      %p166 = por %p164, %p165
      %p167 = scmp.ne.s32.totalorder %s156, %s157
      %p168 = scmp.eq.s32.totalorder %s28, 0
      %p169 = por %p167, %p168
      %p170 = scmp.ne.s32.totalorder %s156, %s157
      %p171 = scmp.eq.s32.totalorder %s29, 1
      %p172 = por %p170, %p171
      %p174 = scmp.ne.s32.totalorder %s157, %s173
      %p175 = scmp.eq.s32.totalorder %s29, 0
      %p176 = por %p174, %p175
      %p177 = scmp.le.s32.totalorder 1, %s23
      %p178 = scmp.lt.s32.totalorder %s23, 3
      %p179 = pnand %p177, %p178
      %p180 = pneg %p179
      // Predicated region
      $region9: #{tpu_custom_call.1} parent=5 // pred_check
        _
      $region10: #{tpu_custom_call.1} parent=5 // pred_check_branch
        %182 = sbr.rel (%p179) target = $region12
      $region11: #{tpu_custom_call.1} parent=5 // pred_region
        %s183 = ssub.s32 %s23, 1
      $region12: #{tpu_custom_call.1} parent=5 // pred_fallthru
        _
      %p184 = scmp.lt.s32.totalorder %s23, 2
      // Predicated region
      $region13: #{tpu_custom_call.1} parent=5 // pred_check
        %p185 = pneg %p184
      $region14: #{tpu_custom_call.1} parent=5 // pred_check_branch
        %187 = sbr.rel (%p185) target = $region16
      $region15: #{tpu_custom_call.1} parent=5 // pred_region
        // Predicated region
        $region17: #{tpu_custom_call.1} parent=15 // pred_check
          %p188 = pneg %p57
        $region18: #{tpu_custom_call.1} parent=15 // pred_check_branch
          %190 = sbr.rel (%p188) target = $region20
        $region19: #{tpu_custom_call.1} parent=15 // pred_region
          %s191 = sand.u32 %s47, 1
          %s192 = scalar_lea.sflag [#allocation3], %s191
          %s193 = sand.u32 %s47, 1
          %s194 = smul.addr %s193, 8
          %s195 = scalar_lea.vmem [#allocation2], %s194
          %s196 = sadd.s32 %s30, %s31
          %s198 = ssub.s32 128, 128
          %199 = vsyncadd %s192, %s198
          %s200 = smul.addr %s196, 128
          %s201 = scalar_lea.hbm %s0, %s200
          %s203 = sshll.u32 %s195, 4
          %s204 = int_to_ptr.vmem [resolvable:$true] %s203
          %206 = dma.hbm_to_vmem [thread:$0]  %s201, 128, %s204, %s192
        $region20: #{tpu_custom_call.1} parent=15 // pred_fallthru
          _
        // Predicated region
        $region21: #{tpu_custom_call.1} parent=15 // pred_check
          %p207 = pneg %p85
        $region22: #{tpu_custom_call.1} parent=15 // pred_check_branch
          %209 = sbr.rel (%p207) target = $region24
        $region23: #{tpu_custom_call.1} parent=15 // pred_region
          %s210 = sand.u32 %s75, 1
          %s211 = scalar_lea.sflag [#allocation6], %s210
          %s212 = sand.u32 %s75, 1
          %s213 = smul.addr %s212, 8
          %s214 = scalar_lea.vmem [#allocation5], %s213
          %s215 = sadd.s32 %s30, %s31
          %s217 = ssub.s32 128, 128
          %218 = vsyncadd %s211, %s217
          %s219 = smul.addr %s215, 128
          %s220 = scalar_lea.hbm %s1, %s219
          %s222 = sshll.u32 %s214, 4
          %s223 = int_to_ptr.vmem [resolvable:$true] %s222
          %225 = dma.hbm_to_vmem [thread:$0]  %s220, 128, %s223, %s211
        $region24: #{tpu_custom_call.1} parent=15 // pred_fallthru
          _
      $region16: #{tpu_custom_call.1} parent=5 // pred_fallthru
        _
      %p226 = scmp.le.s32.totalorder 1, %s23
      %p227 = scmp.lt.s32.totalorder %s23, 3
      %p228 = pnand %p226, %p227
      %p229 = pneg %p228
      // Predicated region
      $region25: #{tpu_custom_call.1} parent=5 // pred_check
        _
      $region26: #{tpu_custom_call.1} parent=5 // pred_check_branch
        %231 = sbr.rel (%p228) target = $region28
      $region27: #{tpu_custom_call.1} parent=5 // pred_region
        %s232 = ssub.s32 %s23, 1
        %s233 = sand.u32 %s50, 1
        %s234 = scalar_lea.sflag [#allocation3], %s233
        %s235 = sand.u32 %s50, 1
        %s236 = smul.addr %s235, 8
        %s237 = scalar_lea.vmem [#allocation2], %s236
        // Predicated region
        $region29: #{tpu_custom_call.1} parent=27 // pred_check
          %p238 = pneg %p63
        $region30: #{tpu_custom_call.1} parent=27 // pred_check_branch
          %240 = sbr.rel (%p238) target = $region32
        $region31: #{tpu_custom_call.1} parent=27 // pred_region
          %241 = dma.done %s234, 128
        $region32: #{tpu_custom_call.1} parent=27 // pred_fallthru
          _
        %s242 = sand.u32 %s78, 1
        %s243 = scalar_lea.sflag [#allocation6], %s242
        %s244 = sand.u32 %s78, 1
        %s245 = smul.addr %s244, 8
        %s246 = scalar_lea.vmem [#allocation5], %s245
        // Predicated region
        $region33: #{tpu_custom_call.1} parent=27 // pred_check
          %p247 = pneg %p91
        $region34: #{tpu_custom_call.1} parent=27 // pred_check_branch
          %249 = sbr.rel (%p247) target = $region36
        $region35: #{tpu_custom_call.1} parent=27 // pred_region
          %250 = dma.done %s243, 128
        $region36: #{tpu_custom_call.1} parent=27 // pred_fallthru
          _
        %s251 = sand.u32 %s50, 1
        %s252 = scalar_lea.sflag [#allocation3], %s251
        %s253 = sand.u32 %s50, 1
        %s254 = smul.addr %s253, 8
        %s255 = scalar_lea.vmem [#allocation2], %s254
        %p256 = pneg %p63
        %p257 = pneg %p60
        %s258 = sand.u32 %s78, 1
        %s259 = scalar_lea.sflag [#allocation6], %s258
        %s260 = sand.u32 %s78, 1
        %s261 = smul.addr %s260, 8
        %s262 = scalar_lea.vmem [#allocation5], %s261
        %p263 = pneg %p91
        %p264 = pneg %p88
        %p265 = pneg %p117
        %p266 = pneg %p114
        %s267 = sand.u32 %s104, 1
        %s268 = scalar_lea.sflag [#allocation4], %s267
        %s269 = sand.u32 %s104, 1
        %s270 = smul.addr %s269, 8
        %s271 = scalar_lea.vmem [#allocation7], %s270
        %p272 = pneg %p143
        %p273 = pneg %p140
        %s274 = sand.u32 %s28, 1
        %s275 = scalar_lea.sflag [#allocation9], %s274
        %s276 = sand.u32 %s130, 1
        %s277 = smul.addr %s276, 8
        %s278 = scalar_lea.vmem [#allocation8], %s277
        %p279 = pneg %p169
        %p280 = pneg %p166
        %s281 = sand.u32 %s28, 1
        %s282 = scalar_lea.sflag [#allocation9], %s281
        %s283 = sand.u32 %s156, 1
        %s284 = smul.addr %s283, 8
        %s285 = scalar_lea.vmem [#allocation10], %s284
        %s286 = sadd.s32 %s32, %s33
        %s287 = sadd.s32 %s32, %s33
        %p288 = scmp.eq.s32.totalorder %s33, 0
        // Predicated region
        $region37: #{tpu_custom_call.1} parent=27 // pred_check
          %p289 = pneg %p288
        $region38: #{tpu_custom_call.1} parent=27 // pred_check_branch
          %291 = sbr.rel (%p289) target = $region40
        $region39: #{tpu_custom_call.1} parent=27 // pred_region
          %292 = vst [vmem:[%s271] sm:$0xff] 0.0
          %293 = vst [vmem:[%s278] sm:$0xff] 0.0
          %294 = vst [vmem:[%s285] sm:$0xff] 0.0
        $region40: #{tpu_custom_call.1} parent=27 // pred_fallthru
          _
        %v295 = vld [vmem:[%s237] sm:$0xff]
        %v296 = vld [vmem:[%s246] sm:$0xff]
        %v297 = vsub.f32 0.0, %v295
        %v298 = vmul.f32 %v297, 1.442695
        %v299 = vpow.pop %v298
        %v300 = vadd.f32 %v299, 1.0
        %v301 = vrcp.pop %v300
        %v302 = vld [vmem:[%s271] sm:$0xff]
        %v303 = vmul.f32 %v296, %v301
        %v304 = vadd.f32 %v303, 0.0
        %v305 = vadd.f32 %v302, %v304
        %306 = vst [vmem:[%s271] sm:$0xff] %v305
        %v307 = vld [vmem:[%s278] sm:$0xff]
        %v308 = vadd.f32 %v301, 0.0
        %v309 = vadd.f32 %v307, %v308
        %310 = vst [vmem:[%s278] sm:$0xff] %v309
        %v311 = vld [vmem:[%s285] sm:$0xff]
        %v312 = vadd.f32 %v296, 0.0
        %v313 = vadd.f32 %v311, %v312
        %314 = vst [vmem:[%s285] sm:$0xff] %v313
        %s315 = sand.u32 %s104, 1
        %s316 = scalar_lea.sflag [#allocation4], %s315
        %s317 = sand.u32 %s104, 1
        %s318 = smul.addr %s317, 8
        %s319 = scalar_lea.vmem [#allocation7], %s318
        %s320 = sand.u32 %s28, 1
        %s321 = scalar_lea.sflag [#allocation9], %s320
        %s322 = sand.u32 %s130, 1
        %s323 = smul.addr %s322, 8
        %s324 = scalar_lea.vmem [#allocation8], %s323
        %s325 = sand.u32 %s28, 1
        %s326 = scalar_lea.sflag [#allocation9], %s325
        %s327 = sand.u32 %s156, 1
        %s328 = smul.addr %s327, 8
        %s329 = scalar_lea.vmem [#allocation10], %s328
        // Predicated region
        $region41: #{tpu_custom_call.1} parent=27 // pred_check
          %p330 = pneg %p114
        $region42: #{tpu_custom_call.1} parent=27 // pred_check_branch
          %332 = sbr.rel (%p330) target = $region44
        $region43: #{tpu_custom_call.1} parent=27 // pred_region
          %s334 = ssub.s32 128, 128
          %335 = vsyncadd %s316, %s334
          %s336 = smul.addr %s32, 128
          %s337 = scalar_lea.hbm %s2, %s336
          %s339 = sshll.u32 %s319, 4
          %s340 = int_to_ptr.vmem [resolvable:$true] %s339
          %342 = dma.vmem_to_hbm [thread:$0]  %s340, 128, %s337, %s316
        $region44: #{tpu_custom_call.1} parent=27 // pred_fallthru
          _
        // Predicated region
        $region45: #{tpu_custom_call.1} parent=27 // pred_check
          %p343 = pneg %p140
        $region46: #{tpu_custom_call.1} parent=27 // pred_check_branch
          %345 = sbr.rel (%p343) target = $region48
        $region47: #{tpu_custom_call.1} parent=27 // pred_region
          %s347 = ssub.s32 128, 128
          %348 = vsyncadd %s321, %s347
          %s349 = smul.addr %s32, 128
          %s350 = scalar_lea.hbm %s3, %s349
          %s352 = sshll.u32 %s324, 4
          %s353 = int_to_ptr.vmem [resolvable:$true] %s352
          %355 = dma.vmem_to_hbm [thread:$0]  %s353, 128, %s350, %s321
        $region48: #{tpu_custom_call.1} parent=27 // pred_fallthru
          _
        // Predicated region
        $region49: #{tpu_custom_call.1} parent=27 // pred_check
          %p356 = pneg %p166
        $region50: #{tpu_custom_call.1} parent=27 // pred_check_branch
          %358 = sbr.rel (%p356) target = $region52
        $region51: #{tpu_custom_call.1} parent=27 // pred_region
          %s360 = ssub.s32 128, 128
          %361 = vsyncadd %s326, %s360
          %s362 = smul.addr %s32, 128
          %s363 = scalar_lea.hbm %s4, %s362
          %s365 = sshll.u32 %s329, 4
          %s366 = int_to_ptr.vmem [resolvable:$true] %s365
          %368 = dma.vmem_to_hbm [thread:$0]  %s366, 128, %s363, %s326
        $region52: #{tpu_custom_call.1} parent=27 // pred_fallthru
          _
      $region28: #{tpu_custom_call.1} parent=5 // pred_fallthru
        _
      %p369 = scmp.le.s32.totalorder 2, %s23
      // Predicated region
      $region53: #{tpu_custom_call.1} parent=5 // pred_check
        %p370 = pneg %p369
      $region54: #{tpu_custom_call.1} parent=5 // pred_check_branch
        %372 = sbr.rel (%p370) target = $region56
      $region55: #{tpu_custom_call.1} parent=5 // pred_region
        %s373 = ssub.s32 %s23, 2
        // Predicated region
        $region57: #{tpu_custom_call.1} parent=55 // pred_check
          %p374 = pneg %p120
        $region58: #{tpu_custom_call.1} parent=55 // pred_check_branch
          %376 = sbr.rel (%p374) target = $region60
        $region59: #{tpu_custom_call.1} parent=55 // pred_region
          %s377 = sand.u32 %s105, 1
          %s378 = scalar_lea.sflag [#allocation4], %s377
          %s379 = sand.u32 %s105, 1
          %s380 = smul.addr %s379, 8
          %s381 = scalar_lea.vmem [#allocation7], %s380
          %382 = dma.done %s378, 128
        $region60: #{tpu_custom_call.1} parent=55 // pred_fallthru
          _
        // Predicated region
        $region61: #{tpu_custom_call.1} parent=55 // pred_check
          %p383 = pneg %p146
        $region62: #{tpu_custom_call.1} parent=55 // pred_check_branch
          %385 = sbr.rel (%p383) target = $region64
        $region63: #{tpu_custom_call.1} parent=55 // pred_region
          %s386 = sand.u32 %s29, 1
          %s387 = scalar_lea.sflag [#allocation9], %s386
          %s388 = sand.u32 %s131, 1
          %s389 = smul.addr %s388, 8
          %s390 = scalar_lea.vmem [#allocation8], %s389
          %391 = dma.done %s387, 128
        $region64: #{tpu_custom_call.1} parent=55 // pred_fallthru
          _
        // Predicated region
        $region65: #{tpu_custom_call.1} parent=55 // pred_check
          %p392 = pneg %p172
        $region66: #{tpu_custom_call.1} parent=55 // pred_check_branch
          %394 = sbr.rel (%p392) target = $region68
        $region67: #{tpu_custom_call.1} parent=55 // pred_region
          %s395 = sand.u32 %s29, 1
          %s396 = scalar_lea.sflag [#allocation9], %s395
          %s397 = sand.u32 %s157, 1
          %s398 = smul.addr %s397, 8
          %s399 = scalar_lea.vmem [#allocation10], %s398
          %400 = dma.done %s396, 128
        $region68: #{tpu_custom_call.1} parent=55 // pred_fallthru
          _
      $region56: #{tpu_custom_call.1} parent=5 // pred_fallthru
        _
    $region6: #{tpu_custom_call.1} parent=1 // loop_footer
      %s27 = sadd.s32 1, %s23
    $region7: #{tpu_custom_call.1} parent=1 // loop_footer_branch
      %22 = sbr.rel target = $region3
    $region8: #{tpu_custom_call.1} parent=1 // loop_exit
      _
    %401 = vsyncpa [#allocation3], 1
    %s402 = scalar_lea.sflag [#allocation3], 1
    %403 = vsyncpa %s402, 1
    %404 = vsyncpa [#allocation6], 1
    %s405 = scalar_lea.sflag [#allocation6], 1
    %406 = vsyncpa %s405, 1
    %407 = vsyncpa [#allocation4], 1
    %s408 = scalar_lea.sflag [#allocation4], 1
    %409 = vsyncpa %s408, 1
    %410 = vsyncpa [#allocation9], 1
    %s411 = scalar_lea.sflag [#allocation9], 1
    %412 = vsyncpa %s411, 1

</llo_original>
